<compile_context>
chip_gen: v5e
topology: v5e:2x2
jax: 0.10.0
libtpu: 0.0.40
codegen_flags: <defaults>
</compile_context>

<pallas_src>
import functools

import jax
import jax.numpy as jnp
from jax.experimental import pallas as pl
from jax.experimental.pallas import tpu as pltpu


def _round_up(x, m):
    return ((x + m - 1) // m) * m


def _vmem_cap_bytes():
    # Per-generation VMEM cap (v7x has 64 MiB/TC, v5e/v6e have 128 MiB).
    try:
        return int(0.8 * pltpu.get_tpu_info().vmem_capacity_bytes)
    except Exception:
        return 48 * 2**20  # safe fallback for v7x; conservative on v5e/v6e


def attention_kernel(obj_ref, att2_ref, we_ref, wf_ref, awe_ref, alpha_ref, *, n_valid):
    # obj_ref:   (TB, Npad, Dobj)  encoded-objects tile (bf16 or f32)
    # att2_ref:  (TB, A)           precomputed decoder_att(decoder_hidden) + b_enc, f32
    # we_ref:    (Dobj, A)         encoder_att weight (transposed), MXU dtype
    # wf_ref:    (1, A)            full_att weight row, f32
    # awe_ref:   (TB, Dobj)        attention-weighted encoding (lane-dense slab), f32
    # alpha_ref: (TB, Npad)        attention weights (lane-dense slab), f32
    tb, n_pad, dobj = obj_ref.shape
    a = we_ref.shape[1]

    obj = obj_ref[...]                                        # (TB, Npad, Dobj)

    # encoder_att over all TB*Npad rows in one MXU push (bf16 operands, f32 accumulate).
    # Npad % 8 == 0 (wrapper pads), so this reshape is layout-preserving -- no VMEM copy.
    att1 = jnp.dot(obj.reshape(tb * n_pad, dobj), we_ref[...],
                   preferred_element_type=jnp.float32).reshape(tb, n_pad, a)

    # decoder_att (+ b_enc, folded by the wrapper) broadcast over the object axis.
    h = jnp.maximum(att1 + att2_ref[...][:, None, :], 0.0)    # (TB, Npad, A) f32

    # full_att -> one score per object: VPU multiply + XLU lane reduction (an (A,1) MXU
    # matmul would waste almost every systolic column). b_full is dropped: softmax is
    # shift-invariant, so it cannot affect alpha or awe.
    scores = jnp.sum(h * wf_ref[...], axis=-1)                # (TB, Npad) f32

    if n_valid != n_pad:  # static: only emitted when the object axis was padded
        col = jax.lax.broadcasted_iota(jnp.int32, (tb, n_pad), 1)
        scores = jnp.where(col < n_valid, scores, -1e30)      # mask padded objects

    # Softmax over the object (lane) axis; stays lane-major so the store is a plain vst.
    m = jnp.max(scores, axis=-1, keepdims=True)               # (TB, 1)
    e = jnp.exp(scores - m)
    denom = jnp.sum(e, axis=-1, keepdims=True)                # (TB, 1)
    r = pl.reciprocal(denom, approx=True)                     # EUP slot (nearly free)
    r = r * (2.0 - denom * r)                                 # one Newton step -> f32 accuracy
    alpha = e * r                                             # (TB, Npad) f32

    # Attention-weighted encoding: multiply in the storage dtype (bf16 packs 2/lane on
    # v6e/v7x VPUs), accumulate the object-axis sum in f32.
    prod = obj * alpha.astype(obj.dtype)[:, :, None]          # (TB, Npad, Dobj)
    awe = jnp.sum(prod.astype(jnp.float32), axis=1)           # (TB, Dobj) f32

    awe_ref[...] = awe.astype(awe_ref.dtype)
    alpha_ref[...] = alpha.astype(alpha_ref.dtype)


def attention_forward(object_out, decoder_hidden, params, *, tb=None,
                      mxu_dtype=jnp.bfloat16):
    """object_out: (B, N, Dobj) f32, decoder_hidden: (B, Ddec) f32.

    Returns (attention_weighted_encoding (B, Dobj) f32, alpha (B, N) f32).
    """
    B, N, Dobj = object_out.shape
    A = params["w_enc"].shape[0]

    # ---- pad the object axis to a sublane multiple so in-kernel reshapes never cross
    #      (8,128) tile boundaries (important for real shapes like N=36).
    N_pad = _round_up(N, 8)

    # ---- batch tile: target ~512 MXU rows per step; keep >= 2 grid steps when B > 8 so
    #      dimension_semantics=("parallel",) can shard across v7x's two TensorCores
    #      (no-op on v5e/v6e with 1 TC/chip).
    if tb is None:
        if B <= 8:
            tb = B                                   # tiny batch: one step covers it all
        else:
            tb = _round_up(max(8, pl.cdiv(512, N_pad)), 8)
            tb = min(tb, max(8, (B // 2) // 8 * 8))  # ensure grid >= 2 steps
    else:
        tb = min(tb, B)
        if tb < B:
            tb = max(8, (tb // 8) * 8)
    b_pad = pl.cdiv(B, tb) * tb

    # ---- hoist decoder_att to one dense XLA matmul and fold b_enc into it
    #      (exact: both biases are added before the ReLU).
    att2 = (decoder_hidden @ params["w_dec"].T + params["b_dec"]
            + params["b_enc"]).astype(jnp.float32)            # (B, A)

    obj = object_out.astype(mxu_dtype)                        # bf16 in HBM -> half the DMA bytes
    if N_pad != N:
        obj = jnp.pad(obj, ((0, 0), (0, N_pad - N), (0, 0)))
    if b_pad != B:
        obj = jnp.pad(obj, ((0, b_pad - B), (0, 0), (0, 0)))
        att2 = jnp.pad(att2, ((0, b_pad - B), (0, 0)))

    we_t = params["w_enc"].T.astype(mxu_dtype)                # (Dobj, A), MXU dtype
    wf = params["w_full"].reshape(1, A).astype(jnp.float32)   # full_att weight row
    # b_full intentionally dropped: it cannot affect alpha or awe (softmax shift invariance).

    bpe = jnp.dtype(mxu_dtype).itemsize
    vmem_cap = _vmem_cap_bytes()

    def _run(single_buffer_weights):
        w_bufs = 1 if single_buffer_weights else 2
        # Explicit VMEM budget: double-buffered tiles + weights + temporaries + headroom.
        est = (2 * tb * N_pad * Dobj * bpe                    # obj tile (double-buffered)
               + 2 * tb * A * 4                               # att2 tile
               + w_bufs * (Dobj * A * bpe + A * 4)            # weights
               + 2 * (tb * Dobj + tb * N_pad) * 4             # output slabs
               + 3 * tb * N_pad * A * 4                       # att1 / h / h*wf temporaries
               + tb * N_pad * Dobj * (bpe + 4))               # awe product + f32 convert
        vmem_limit = int(min(vmem_cap, max(16 * 2**20, int(1.25 * est))))

        if single_buffer_weights:
            # Grid-constant weights: single-buffer them (halves their VMEM footprint,
            # matters against v7x's 64 MiB/TC budget).
            we_spec = pl.BlockSpec((Dobj, A), lambda b: (0, 0),
                                   pipeline_mode=pl.Buffered(1))
            wf_spec = pl.BlockSpec((1, A), lambda b: (0, 0),
                                   pipeline_mode=pl.Buffered(1))
        else:
            we_spec = pl.BlockSpec((Dobj, A), lambda b: (0, 0))
            wf_spec = pl.BlockSpec((1, A), lambda b: (0, 0))

        return pl.pallas_call(
            functools.partial(attention_kernel, n_valid=N),
            out_shape=(
                jax.ShapeDtypeStruct((b_pad, Dobj), jnp.float32),
                jax.ShapeDtypeStruct((b_pad, N_pad), jnp.float32),
            ),
            grid_spec=pltpu.PrefetchScalarGridSpec(
                num_scalar_prefetch=0,
                grid=(b_pad // tb,),
                in_specs=[
                    pl.BlockSpec((tb, N_pad, Dobj), lambda b: (b, 0, 0)),  # object tile
                    pl.BlockSpec((tb, A), lambda b: (b, 0)),               # att2 tile
                    we_spec,                                               # W_enc^T
                    wf_spec,                                               # W_full row
                ],
                out_specs=[
                    pl.BlockSpec((tb, Dobj), lambda b: (b, 0)),            # awe slab
                    pl.BlockSpec((tb, N_pad), lambda b: (b, 0)),           # alpha slab
                ],
            ),
            compiler_params=pltpu.CompilerParams(
                dimension_semantics=("parallel",),   # shard batch tiles across v7x TCs
                vmem_limit_bytes=vmem_limit,
            ),
        )(obj, att2, we_t, wf)

    try:
        awe, alpha = _run(True)
    except Exception:
        # pipeline_mode=pl.Buffered(1) unsupported by this jax build / lowering;
        # fall back to default double-buffered weights (results identical).
        awe, alpha = _run(False)

    return awe[:B], alpha[:B, :N]


def reference_forward(object_out, decoder_hidden, params):
    att1 = object_out @ params["w_enc"].T + params["b_enc"]
    att2 = decoder_hidden @ params["w_dec"].T + params["b_dec"]
    h = jnp.maximum(att1 + att2[:, None, :], 0.0)
    att = (h @ params["w_full"].T + params["b_full"])[..., 0]
    alpha = jax.nn.softmax(att, axis=1)
    awe = jnp.sum(object_out * alpha[..., None], axis=1)
    return awe, alpha


if __name__ == "__main__":
    # Small shapes consistent with the module's forward.
    B, N = 2, 8                 # batch, num_objects
    object_dim = 32
    decoder_dim = 32
    attention_dim = 32

    key = jax.random.PRNGKey(0)
    k1, k2, k3, k4, k5, k6, k7, k8, k9, k10 = jax.random.split(key, 10)

    # Deterministic parameter init (shapes from the nn.Linear definitions).
    params = {
        "w_enc": jax.random.normal(k1, (attention_dim, object_dim), jnp.float32) * 0.1,
        "b_enc": jax.random.normal(k2, (attention_dim,), jnp.float32) * 0.1,
        "w_dec": jax.random.normal(k3, (attention_dim, decoder_dim), jnp.float32) * 0.1,
        "b_dec": jax.random.normal(k4, (attention_dim,), jnp.float32) * 0.1,
        "w_full": jax.random.normal(k5, (1, attention_dim), jnp.float32) * 0.1,
        "b_full": jax.random.normal(k6, (1,), jnp.float32) * 0.1,
    }

    object_out = jax.random.normal(k7, (B, N, object_dim), jnp.float32)
    decoder_hidden = jax.random.normal(k8, (B, decoder_dim), jnp.float32)
    awe_ref, alpha_ref = reference_forward(object_out, decoder_hidden, params)

    # 1) Exact path (f32 MXU operands): tight tolerance vs the f32 reference.
    awe32, alpha32 = attention_forward(object_out, decoder_hidden, params,
                                       mxu_dtype=jnp.float32)
    jax.block_until_ready((awe32, alpha32))
    assert awe32.shape == (B, object_dim) and alpha32.shape == (B, N)
    assert jnp.allclose(awe32, awe_ref, atol=1e-4, rtol=1e-4), "awe mismatch (f32 path)"
    assert jnp.allclose(alpha32, alpha_ref, atol=1e-4, rtol=1e-4), "alpha mismatch (f32 path)"

    # 2) Default performance path (bf16 MXU operands, f32 softmax/accumulation).
    awe, alpha = attention_forward(object_out, decoder_hidden, params)
    jax.block_until_ready((awe, alpha))
    assert awe.shape == (B, object_dim) and alpha.shape == (B, N)
    assert jnp.allclose(awe, awe_ref, atol=2e-2, rtol=2e-2), "awe mismatch (bf16 path)"
    assert jnp.allclose(alpha, alpha_ref, atol=2e-2, rtol=2e-2), "alpha mismatch (bf16 path)"

    # 3) Unaligned / multi-step case: B=10, N=6 exercises batch + object padding,
    #    the -inf score mask, and a 2-step parallel grid. Exact f32 path, tight check.
    B2, N2 = 10, 6
    object_out2 = jax.random.normal(k9, (B2, N2, object_dim), jnp.float32)
    decoder_hidden2 = jax.random.normal(k10, (B2, decoder_dim), jnp.float32)
    awe2_ref, alpha2_ref = reference_forward(object_out2, decoder_hidden2, params)
    awe2, alpha2 = attention_forward(object_out2, decoder_hidden2, params,
                                     mxu_dtype=jnp.float32)
    jax.block_until_ready((awe2, alpha2))
    assert awe2.shape == (B2, object_dim) and alpha2.shape == (B2, N2)
    assert jnp.allclose(awe2, awe2_ref, atol=1e-4, rtol=1e-4), "awe mismatch (padded case)"
    assert jnp.allclose(alpha2, alpha2_ref, atol=1e-4, rtol=1e-4), "alpha mismatch (padded case)"

    print("KERNEL_OK")
</pallas_src>

<mosaic_0001>
module attributes {stable_mosaic.version = 11 : i64} {
  func.func @attention_kernel(%arg0: i32, %arg1: memref<2x8x32xf32, #tpu.memory_space<vmem>>, %arg2: memref<2x32xf32, #tpu.memory_space<vmem>>, %arg3: memref<32x32xf32, #tpu.memory_space<vmem>>, %arg4: memref<1x32xf32, #tpu.memory_space<vmem>>, %arg5: memref<2x32xf32, #tpu.memory_space<vmem>>, %arg6: memref<2x8xf32, #tpu.memory_space<vmem>>) attributes {dimension_semantics = [#tpu.dimension_semantics<parallel>], iteration_bounds = array<i64: 1>, scalar_prefetch = 0 : i64, scratch_operands = 0 : i64, tpu.core_type = #tpu.core_type<tc>, window_params = [{transform_indices = @transform_0, window_bounds = array<i64: 2, 8, 32>}, {transform_indices = @transform_1, window_bounds = array<i64: 2, 32>}, {pipeline_mode = #tpu.pipeline_mode<synchronous>, transform_indices = @transform_2, window_bounds = array<i64: 32, 32>}, {pipeline_mode = #tpu.pipeline_mode<synchronous>, transform_indices = @transform_3, window_bounds = array<i64: 1, 32>}, {transform_indices = @transform_4, window_bounds = array<i64: 2, 32>}, {transform_indices = @transform_5, window_bounds = array<i64: 2, 8>}]} {
    %c0 = arith.constant 0 : index
    %c0_0 = arith.constant 0 : index
    %c0_1 = arith.constant 0 : index
    %0 = vector.load %arg1[%c0, %c0_0, %c0_1] : memref<2x8x32xf32, #tpu.memory_space<vmem>>, vector<2x8x32xf32>
    %1 = vector.shape_cast %0 : vector<2x8x32xf32> to vector<16x32xf32>
    %c0_2 = arith.constant 0 : index
    %c0_3 = arith.constant 0 : index
    %2 = vector.load %arg3[%c0_2, %c0_3] : memref<32x32xf32, #tpu.memory_space<vmem>>, vector<32x32xf32>
    %cst = arith.constant dense<0.000000e+00> : vector<16x32xf32>
    %3 = tpu.matmul %1, %2, %cst {dimension_numbers = #tpu.dot_dimension_numbers<[1], [0], [0], [1], [0, 0, 1, 1], [], []>} : vector<16x32xf32>, vector<32x32xf32>, vector<16x32xf32> -> vector<16x32xf32>
    %4 = vector.shape_cast %3 : vector<16x32xf32> to vector<2x8x32xf32>
    %c0_4 = arith.constant 0 : index
    %c0_5 = arith.constant 0 : index
    %5 = vector.load %arg2[%c0_4, %c0_5] : memref<2x32xf32, #tpu.memory_space<vmem>>, vector<2x32xf32>
    %6 = vector.shape_cast %5 : vector<2x32xf32> to vector<2x1x32xf32>
    %7 = vector.broadcast %6 : vector<2x1x32xf32> to vector<2x8x32xf32>
    %8 = arith.addf %4, %7 : vector<2x8x32xf32>
    %cst_6 = arith.constant 0.000000e+00 : f32
    %9 = vector.broadcast %cst_6 : f32 to vector<2x8x32xf32>
    %10 = arith.maximumf %8, %9 : vector<2x8x32xf32>
    %c0_7 = arith.constant 0 : index
    %c0_8 = arith.constant 0 : index
    %11 = vector.load %arg4[%c0_7, %c0_8] : memref<1x32xf32, #tpu.memory_space<vmem>>, vector<1x32xf32>
    %12 = vector.shape_cast %11 : vector<1x32xf32> to vector<1x1x32xf32>
    %13 = vector.broadcast %12 : vector<1x1x32xf32> to vector<2x8x32xf32>
    %14 = arith.mulf %10, %13 : vector<2x8x32xf32>
    %cst_9 = arith.constant dense<0.000000e+00> : vector<2x8xf32>
    %15 = vector.multi_reduction <add>, %14, %cst_9 [2] : vector<2x8x32xf32> to vector<2x8xf32>
    %cst_10 = arith.constant dense<0xFF800000> : vector<2xf32>
    %16 = vector.multi_reduction <maximumf>, %15, %cst_10 [1] : vector<2x8xf32> to vector<2xf32>
    %17 = vector.shape_cast %16 : vector<2xf32> to vector<2x1xf32>
    %18 = vector.broadcast %17 : vector<2x1xf32> to vector<2x8xf32>
    %19 = arith.subf %15, %18 : vector<2x8xf32>
    %20 = math.exp %19 : vector<2x8xf32>
    %cst_11 = arith.constant dense<0.000000e+00> : vector<2xf32>
    %21 = vector.multi_reduction <add>, %20, %cst_11 [1] : vector<2x8xf32> to vector<2xf32>
    %22 = vector.shape_cast %21 : vector<2xf32> to vector<2x1xf32>
    %23 = tpu.reciprocal %22 {approx = true} : vector<2x1xf32> -> vector<2x1xf32>
    %24 = arith.mulf %22, %23 : vector<2x1xf32>
    %cst_12 = arith.constant 2.000000e+00 : f32
    %25 = vector.broadcast %cst_12 : f32 to vector<2x1xf32>
    %26 = arith.subf %25, %24 : vector<2x1xf32>
    %27 = arith.mulf %23, %26 : vector<2x1xf32>
    %28 = vector.broadcast %27 : vector<2x1xf32> to vector<2x8xf32>
    %29 = arith.mulf %20, %28 : vector<2x8xf32>
    %30 = vector.shape_cast %29 : vector<2x8xf32> to vector<2x8x1xf32>
    %31 = vector.broadcast %30 : vector<2x8x1xf32> to vector<2x8x32xf32>
    %32 = arith.mulf %0, %31 : vector<2x8x32xf32>
    %cst_13 = arith.constant dense<0.000000e+00> : vector<2x32xf32>
    %33 = vector.multi_reduction <add>, %32, %cst_13 [1] : vector<2x8x32xf32> to vector<2x32xf32>
    %c0_14 = arith.constant 0 : index
    %c0_15 = arith.constant 0 : index
    %34 = vector.load %arg5[%c0_14, %c0_15] : memref<2x32xf32, #tpu.memory_space<vmem>>, vector<2x32xf32>
    tpu.vector_store %arg5[%c0_14, %c0_15], %33 {strides = array<i32>} : memref<2x32xf32, #tpu.memory_space<vmem>>, vector<2x32xf32>,
    %c0_16 = arith.constant 0 : index
    %c0_17 = arith.constant 0 : index
    %35 = vector.load %arg6[%c0_16, %c0_17] : memref<2x8xf32, #tpu.memory_space<vmem>>, vector<2x8xf32>
    tpu.vector_store %arg6[%c0_16, %c0_17], %29 {strides = array<i32>} : memref<2x8xf32, #tpu.memory_space<vmem>>, vector<2x8xf32>,
    return
  }
  func.func @transform_0(%arg0: i32) -> (i32, i32, i32) {
    %c0_i32 = arith.constant 0 : i32
    %c0_i32_0 = arith.constant 0 : i32
    %c0_i32_1 = arith.constant 0 : i32
    return %arg0, %c0_i32, %c0_i32_0 : i32, i32, i32
  }
  func.func @transform_1(%arg0: i32) -> (i32, i32) {
    %c0_i32 = arith.constant 0 : i32
    %c0_i32_0 = arith.constant 0 : i32
    return %arg0, %c0_i32 : i32, i32
  }
  func.func @transform_2(%arg0: i32) -> (i32, i32) {
    %c0_i32 = arith.constant 0 : i32
    %c0_i32_0 = arith.constant 0 : i32
    %c0_i32_1 = arith.constant 0 : i32
    return %c0_i32, %c0_i32_0 : i32, i32
  }
  func.func @transform_3(%arg0: i32) -> (i32, i32) {
    %c0_i32 = arith.constant 0 : i32
    %c0_i32_0 = arith.constant 0 : i32
    %c0_i32_1 = arith.constant 0 : i32
    return %c0_i32, %c0_i32_0 : i32, i32
  }
  func.func @transform_4(%arg0: i32) -> (i32, i32) {
    %c0_i32 = arith.constant 0 : i32
    %c0_i32_0 = arith.constant 0 : i32
    return %arg0, %c0_i32 : i32, i32
  }
  func.func @transform_5(%arg0: i32) -> (i32, i32) {
    %c0_i32 = arith.constant 0 : i32
    %c0_i32_0 = arith.constant 0 : i32
    return %arg0, %c0_i32 : i32, i32
  }
}

module attributes {stable_mosaic.version = 11 : i64} {
  func.func @attention_kernel(%arg0: i32, %arg1: memref<2x8x32xf32, #tpu.memory_space<vmem>>, %arg2: memref<2x32xf32, #tpu.memory_space<vmem>>, %arg3: memref<32x32xf32, #tpu.memory_space<vmem>>, %arg4: memref<1x32xf32, #tpu.memory_space<vmem>>, %arg5: memref<2x32xf32, #tpu.memory_space<vmem>>, %arg6: memref<2x8xf32, #tpu.memory_space<vmem>>) attributes {dimension_semantics = [#tpu.dimension_semantics<parallel>], iteration_bounds = array<i64: 1>, scalar_prefetch = 0 : i64, scratch_operands = 0 : i64, tpu.core_type = #tpu.core_type<tc>, window_params = [{transform_indices = @transform_0, window_bounds = array<i64: 2, 8, 32>}, {transform_indices = @transform_1, window_bounds = array<i64: 2, 32>}, {pipeline_mode = #tpu.pipeline_mode<synchronous>, transform_indices = @transform_2, window_bounds = array<i64: 32, 32>}, {pipeline_mode = #tpu.pipeline_mode<synchronous>, transform_indices = @transform_3, window_bounds = array<i64: 1, 32>}, {transform_indices = @transform_4, window_bounds = array<i64: 2, 32>}, {transform_indices = @transform_5, window_bounds = array<i64: 2, 8>}]} {
    %c0 = arith.constant 0 : index
    %c0_0 = arith.constant 0 : index
    %c0_1 = arith.constant 0 : index
    %0 = vector.load %arg1[%c0, %c0_0, %c0_1] : memref<2x8x32xf32, #tpu.memory_space<vmem>>, vector<2x8x32xf32>
    %1 = vector.shape_cast %0 : vector<2x8x32xf32> to vector<16x32xf32>
    %c0_2 = arith.constant 0 : index
    %c0_3 = arith.constant 0 : index
    %2 = vector.load %arg3[%c0_2, %c0_3] : memref<32x32xf32, #tpu.memory_space<vmem>>, vector<32x32xf32>
    %cst = arith.constant dense<0.000000e+00> : vector<16x32xf32>
    %3 = tpu.matmul %1, %2, %cst {dimension_numbers = #tpu.dot_dimension_numbers<[1], [0], [0], [1], [0, 0, 1, 1], [], []>} : vector<16x32xf32>, vector<32x32xf32>, vector<16x32xf32> -> vector<16x32xf32>
    %4 = vector.shape_cast %3 : vector<16x32xf32> to vector<2x8x32xf32>
    %c0_4 = arith.constant 0 : index
    %c0_5 = arith.constant 0 : index
    %5 = vector.load %arg2[%c0_4, %c0_5] : memref<2x32xf32, #tpu.memory_space<vmem>>, vector<2x32xf32>
    %6 = vector.shape_cast %5 : vector<2x32xf32> to vector<2x1x32xf32>
    %7 = vector.broadcast %6 : vector<2x1x32xf32> to vector<2x8x32xf32>
    %8 = arith.addf %4, %7 : vector<2x8x32xf32>
    %cst_6 = arith.constant 0.000000e+00 : f32
    %9 = vector.broadcast %cst_6 : f32 to vector<2x8x32xf32>
    %10 = arith.maximumf %8, %9 : vector<2x8x32xf32>
    %c0_7 = arith.constant 0 : index
    %c0_8 = arith.constant 0 : index
    %11 = vector.load %arg4[%c0_7, %c0_8] : memref<1x32xf32, #tpu.memory_space<vmem>>, vector<1x32xf32>
    %12 = vector.shape_cast %11 : vector<1x32xf32> to vector<1x1x32xf32>
    %13 = vector.broadcast %12 : vector<1x1x32xf32> to vector<2x8x32xf32>
    %14 = arith.mulf %10, %13 : vector<2x8x32xf32>
    %cst_9 = arith.constant dense<0.000000e+00> : vector<2x8xf32>
    %15 = vector.multi_reduction <add>, %14, %cst_9 [2] : vector<2x8x32xf32> to vector<2x8xf32>
    %cst_10 = arith.constant dense<0xFF800000> : vector<2xf32>
    %16 = vector.multi_reduction <maximumf>, %15, %cst_10 [1] : vector<2x8xf32> to vector<2xf32>
    %17 = vector.shape_cast %16 : vector<2xf32> to vector<2x1xf32>
    %18 = vector.broadcast %17 : vector<2x1xf32> to vector<2x8xf32>
    %19 = arith.subf %15, %18 : vector<2x8xf32>
    %20 = math.exp %19 : vector<2x8xf32>
    %cst_11 = arith.constant dense<0.000000e+00> : vector<2xf32>
    %21 = vector.multi_reduction <add>, %20, %cst_11 [1] : vector<2x8xf32> to vector<2xf32>
    %22 = vector.shape_cast %21 : vector<2xf32> to vector<2x1xf32>
    %23 = tpu.reciprocal %22 {approx = true} : vector<2x1xf32> -> vector<2x1xf32>
    %24 = arith.mulf %22, %23 : vector<2x1xf32>
    %cst_12 = arith.constant 2.000000e+00 : f32
    %25 = vector.broadcast %cst_12 : f32 to vector<2x1xf32>
    %26 = arith.subf %25, %24 : vector<2x1xf32>
    %27 = arith.mulf %23, %26 : vector<2x1xf32>
    %28 = vector.broadcast %27 : vector<2x1xf32> to vector<2x8xf32>
    %29 = arith.mulf %20, %28 : vector<2x8xf32>
    %30 = vector.shape_cast %29 : vector<2x8xf32> to vector<2x8x1xf32>
    %31 = vector.broadcast %30 : vector<2x8x1xf32> to vector<2x8x32xf32>
    %32 = arith.mulf %0, %31 : vector<2x8x32xf32>
    %cst_13 = arith.constant dense<0.000000e+00> : vector<2x32xf32>
    %33 = vector.multi_reduction <add>, %32, %cst_13 [1] : vector<2x8x32xf32> to vector<2x32xf32>
    %c0_14 = arith.constant 0 : index
    %c0_15 = arith.constant 0 : index
    %34 = vector.load %arg5[%c0_14, %c0_15] : memref<2x32xf32, #tpu.memory_space<vmem>>, vector<2x32xf32>
    tpu.vector_store %arg5[%c0_14, %c0_15], %33 {strides = array<i32>} : memref<2x32xf32, #tpu.memory_space<vmem>>, vector<2x32xf32>,
    %c0_16 = arith.constant 0 : index
    %c0_17 = arith.constant 0 : index
    %35 = vector.load %arg6[%c0_16, %c0_17] : memref<2x8xf32, #tpu.memory_space<vmem>>, vector<2x8xf32>
    tpu.vector_store %arg6[%c0_16, %c0_17], %29 {strides = array<i32>} : memref<2x8xf32, #tpu.memory_space<vmem>>, vector<2x8xf32>,
    return
  }
  func.func @transform_0(%arg0: i32) -> (i32, i32, i32) {
    %c0_i32 = arith.constant 0 : i32
    %c0_i32_0 = arith.constant 0 : i32
    %c0_i32_1 = arith.constant 0 : i32
    return %arg0, %c0_i32, %c0_i32_0 : i32, i32, i32
  }
  func.func @transform_1(%arg0: i32) -> (i32, i32) {
    %c0_i32 = arith.constant 0 : i32
    %c0_i32_0 = arith.constant 0 : i32
    return %arg0, %c0_i32 : i32, i32
  }
  func.func @transform_2(%arg0: i32) -> (i32, i32) {
    %c0_i32 = arith.constant 0 : i32
    %c0_i32_0 = arith.constant 0 : i32
    %c0_i32_1 = arith.constant 0 : i32
    return %c0_i32, %c0_i32_0 : i32, i32
  }
  func.func @transform_3(%arg0: i32) -> (i32, i32) {
    %c0_i32 = arith.constant 0 : i32
    %c0_i32_0 = arith.constant 0 : i32
    %c0_i32_1 = arith.constant 0 : i32
    return %c0_i32, %c0_i32_0 : i32, i32
  }
  func.func @transform_4(%arg0: i32) -> (i32, i32) {
    %c0_i32 = arith.constant 0 : i32
    %c0_i32_0 = arith.constant 0 : i32
    return %arg0, %c0_i32 : i32, i32
  }
  func.func @transform_5(%arg0: i32) -> (i32, i32) {
    %c0_i32 = arith.constant 0 : i32
    %c0_i32_0 = arith.constant 0 : i32
    return %arg0, %c0_i32 : i32, i32
  }
}

</mosaic_0001>

<llo_original>
// kernel: tpu_custom_call.1
$region0: #{tpu_custom_call.1}
  #allocation0 [shape = 'u32[]', space=smem, size = 0x4, offset = 0x4, fixed_abs, tag = 'smem constant byte address 0x4 - core index']
  #allocation1 [shape = 'u32[72,128]{1,0:T(1,128)}', space=vmem, size = 0x9000, scoped, tag = 'internal scratch']
  %s0 = inlined_call_operand.hbm [shape: f32[2,8,32], index: 0, kind: input, shape index: {}]
  %s1 = inlined_call_operand.hbm [shape: f32[2,32], index: 1, kind: input, shape index: {}]
  %s2 = inlined_call_operand.hbm [shape: f32[32,32], index: 2, kind: input, shape index: {}]
  %s3 = inlined_call_operand.vmem [shape: f32[1,32], index: 3, kind: input, shape index: {}]
  %s4 = inlined_call_operand.hbm [shape: f32[2,32], index: 4, kind: output, shape index: {0}]
  %s5 = inlined_call_operand.hbm [shape: f32[2,8], index: 5, kind: output, shape index: {1}]
  %6 = xla_tuple %s4, %s5
  %s7 = sld [smem:[#allocation0]]
  $region46: #{tpu_custom_call.1} parent=0
    _
  %s9 = ssub.s32 1, %s7
  %s10 = scalar_select 0, %s9, %s7
  $region1: #{tpu_custom_call.1} parent=0
    #allocation2 [shape = 'u8[8192]{0}', space=vmem, size = 0x2000, scoped, tag = 'input window, operand 0, single buffered']
    #allocation3 [shape = 's32[1]{0}', space=sflag, size = 0x4, scoped, tag = 'scoped memory for tpu_custom_call.1']
    #allocation4 [shape = 's32[1]{0}', space=sflag, size = 0x4, scoped, tag = 'scoped memory for tpu_custom_call.1']
    #allocation5 [shape = 'u8[1024]{0}', space=vmem, size = 0x400, scoped, tag = 'input window, operand 1, single buffered']
    #allocation6 [shape = 's32[1]{0}', space=sflag, size = 0x4, scoped, tag = 'scoped memory for tpu_custom_call.1']
    #allocation7 [shape = 'u8[16384]{0}', space=vmem, size = 0x4000, scoped, tag = 'input window, operand 2, single buffered']
    #allocation8 [shape = 'u8[1024]{0}', space=vmem, size = 0x400, scoped, tag = 'output window, operand 0, single buffered']
    #allocation9 [shape = 'u8[1024]{0}', space=vmem, size = 0x400, scoped, tag = 'output window, operand 1, single buffered']
    #allocation10 [shape = 's32[1]{0}', space=sflag, size = 0x4, scoped, tag = 'scoped memory for tpu_custom_call.1']
    %11 = vsyncpa [#allocation3], 0
    %12 = vsyncpa [#allocation6], 0
    %13 = vsyncpa [#allocation4], 0
    %14 = vsyncpa [#allocation10], 0
    // Predicated region
    $region2: #{tpu_custom_call.1} parent=1 // pred_check
      _
    $region3: #{tpu_custom_call.1} parent=1 // pred_check_branch
      %16 = sbr.rel (0) target = $region5
    $region4: #{tpu_custom_call.1} parent=1 // pred_region
      %18 = vsyncadd [#allocation3], 0
      %s19 = sshll.u32 %s0, 4
      %s20 = int_to_ptr.hbm [resolvable:$true] %s19
      %s21 = sshll.u32 [#allocation2], 4
      %s22 = int_to_ptr.vmem [resolvable:$true] %s21
      %27 = dma.hbm_to_vmem [thread:$0]  %s20, 256, %s22, [#allocation3], 128, 128, 8
    $region5: #{tpu_custom_call.1} parent=1 // pred_fallthru
      _
    // Predicated region
    $region6: #{tpu_custom_call.1} parent=1 // pred_check
      _
    $region7: #{tpu_custom_call.1} parent=1 // pred_check_branch
      %29 = sbr.rel (0) target = $region9
    $region8: #{tpu_custom_call.1} parent=1 // pred_region
      %31 = vsyncadd [#allocation6], 0
      %s33 = sshll.u32 %s1, 4
      %s34 = int_to_ptr.hbm [resolvable:$true] %s33
      %s35 = sshll.u32 [#allocation5], 4
      %s36 = int_to_ptr.vmem [resolvable:$true] %s35
      %38 = dma.hbm_to_vmem [thread:$0]  %s34, 32, %s36, [#allocation6]
    $region9: #{tpu_custom_call.1} parent=1 // pred_fallthru
      _
    // Predicated region
    $region10: #{tpu_custom_call.1} parent=1 // pred_check
      _
    $region11: #{tpu_custom_call.1} parent=1 // pred_check_branch
      %40 = sbr.rel (0) target = $region13
    $region12: #{tpu_custom_call.1} parent=1 // pred_region
      %42 = vsyncadd [#allocation6], 0
      %s43 = sshll.u32 %s2, 4
      %s44 = int_to_ptr.hbm [resolvable:$true] %s43
      %s45 = sshll.u32 [#allocation7], 4
      %s46 = int_to_ptr.vmem [resolvable:$true] %s45
      %51 = dma.hbm_to_vmem [thread:$0]  %s44, 512, %s46, [#allocation6], 128, 128, 8
    $region13: #{tpu_custom_call.1} parent=1 // pred_fallthru
      _
    // Predicated region
    $region14: #{tpu_custom_call.1} parent=1 // pred_check
      _
    $region15: #{tpu_custom_call.1} parent=1 // pred_check_branch
      %53 = sbr.rel (0) target = $region17
    $region16: #{tpu_custom_call.1} parent=1 // pred_region
      _
    $region17: #{tpu_custom_call.1} parent=1 // pred_fallthru
      _
    // Predicated region
    $region18: #{tpu_custom_call.1} parent=1 // pred_check
      _
    $region19: #{tpu_custom_call.1} parent=1 // pred_check_branch
      %55 = sbr.rel (0) target = $region21
    $region20: #{tpu_custom_call.1} parent=1 // pred_region
      %57 = dma.done [#allocation3], 256
    $region21: #{tpu_custom_call.1} parent=1 // pred_fallthru
      _
    // Predicated region
    $region22: #{tpu_custom_call.1} parent=1 // pred_check
      _
    $region23: #{tpu_custom_call.1} parent=1 // pred_check_branch
      %59 = sbr.rel (0) target = $region25
    $region24: #{tpu_custom_call.1} parent=1 // pred_region
      %61 = dma.done [#allocation6], 32
    $region25: #{tpu_custom_call.1} parent=1 // pred_fallthru
      _
    // Predicated region
    $region26: #{tpu_custom_call.1} parent=1 // pred_check
      _
    $region27: #{tpu_custom_call.1} parent=1 // pred_check_branch
      %63 = sbr.rel (0) target = $region29
    $region28: #{tpu_custom_call.1} parent=1 // pred_region
      %65 = dma.done [#allocation6], 512
    $region29: #{tpu_custom_call.1} parent=1 // pred_fallthru
      _
    %v66 = vld [vmem:[#allocation2] sm:$0xff]
    %v67 = vld [vmem:[#allocation2 + $0x8] sm:$0xff]
    %v68 = vld [vmem:[#allocation7] sm:$0xff]
    %v69 = vld [vmem:[#allocation7 + $0x8] sm:$0xff]
    %v70 = vld [vmem:[#allocation7 + $0x10] sm:$0xff]
    %v71 = vld [vmem:[#allocation7 + $0x18] sm:$0xff]
    %vm72 = vcmask 261120
    %v74 = vsel %vm72, %v66, 0
    %v77 = vsel %vm72, %v67, 0
    %79 = vmatpush.msra.mxu0 0.0
    %80 = vmatpush.msra.mxu0 0.0
    %81 = vmatpush.msra.mxu0 0.0
    %82 = vmatpush.msra.mxu0 0.0
    %83 = vmatpush.msra.mxu0 0.0
    %84 = vmatpush.msra.mxu0 0.0
    %85 = vmatpush.msra.mxu0 0.0
    %86 = vmatpush.msra.mxu0 0.0
    %87 = vmatpush.msra.mxu0 0.0
    %88 = vmatpush.msra.mxu0 0.0
    %89 = vmatpush.msra.mxu0 0.0
    %90 = vmatpush.msra.mxu0 0.0
    %91 = vmatpush.msra.mxu0 %v71
    %92 = vmatpush.msra.mxu0 %v70
    %93 = vmatpush.msra.mxu0 %v69
    %94 = vmatpush.msra.mxu0 %v68
    %95 = vmatmul.f32.gmra.mxu0 %v74
    %v96 = vpop.f32.mrf.mxu0
    %v97 = vadd.f32 0.0, %v96
    %98 = vmatmul.f32.gmra.mxu0 %v77
    %v99 = vpop.f32.mrf.mxu0
    %v100 = vadd.f32 0.0, %v99
    %101 = vdwg.mxu0
    %v102 = vld [vmem:[#allocation5] sm:$0x3]
    %v104 = vrot.slane %v102, 1
    %v105 = vperm.slane %v102, 0
    %v106 = vperm.slane %v104, 0
    %v109 = vadd.f32 %v97, %v105
    %v110 = vadd.f32 %v100, %v106
    %v111 = vmax.f32 %v109, 0.0
    %v112 = vmax.f32 %v110, 0.0
    %v113 = vld [vmem:[%s3] sm:$0x1]
    %v115 = vperm.slane %v113, 0
    %v117 = vmul.f32 %v111, %v115
    %v118 = vmul.f32 %v112, %v115
    %v119 = vsel %vm72, %v117, 0.0
    %120 = vadd.xlane.f32.xlu0 %v119
    %v121 = vpop.xlane.xlu0 %120
    %v122 = vsel %vm72, %v118, 0.0
    %123 = vadd.xlane.f32.xlu0 %v122
    %v124 = vpop.xlane.xlu0 %123
    %v127 = vlaneseq
    %v128 = vand.u32 %v127, 127
    %v129 = vperm.slane %v121, %v128
    %v130 = vperm.slane %v124, %v128
    %vm131 = vcmask 1041409
    %v132 = vsel %vm131, %v130, %v129
    %vm134 = vcmask 58368
    %v135 = vsel %vm134, %v132, -inf
    %136 = vmax.xlane.f32.xlu0 %v135
    %v137 = vpop.xlane.xlu0 %136
    %v139 = vperm.slane %v137, 0
    %v140 = vperm.slane %v137, 1
    %v143 = vsub.f32 %v121, %v139
    %v144 = vsub.f32 %v124, %v140
    %v145 = vmul.f32 %v143, 1.442695
    %v146 = vpow.pop %v145
    %v147 = vmul.f32 %v144, 1.442695
    %v148 = vpow.pop %v147
    %151 = vset.pattern.permute.xlu0 0
    %152 = vperm.xlu0 %151, %v146
    %v153 = vpop.permute.xlu0 %152
    %154 = vset.pattern.permute.xlu0 0
    %155 = vperm.xlu0 %154, %v148
    %v156 = vpop.permute.xlu0 %155
    %v157 = vperm.slane %v153, %v128
    %v158 = vperm.slane %v156, %v128
    %v159 = vsel %vm131, %v158, %v157
    %v161 = vsel %vm134, %v159, 0.0
    %162 = vadd.xlane.f32.xlu0 %v161
    %v163 = vpop.xlane.xlu0 %162
    %v164 = vrcp.pop %v163
    %v165 = vmul.f32 %v163, %v164
    %v166 = vsub.f32 2.0, %v165
    %v167 = vmul.f32 %v164, %v166
    %v169 = vperm.slane %v167, 0
    %v170 = vperm.slane %v167, 1
    %v173 = vmul.f32 %v146, %v169
    %v174 = vmul.f32 %v148, %v170
    %176 = vset.pattern.permute.xlu0 0
    %177 = vperm.xlu0 %176, %v173
    %v178 = vpop.permute.xlu0 %177
    %181 = vset.pattern.permute.xlu0 0
    %182 = vperm.xlu0 %181, %v174
    %v183 = vpop.permute.xlu0 %182
    %v185 = vmul.f32 %v66, %v178
    %v186 = vmul.f32 %v67, %v183
    %v187 = vsel %vm72, %v185, 0.0
    %v188 = vrot.slane %v187, 4
    %v189 = vadd.f32 %v187, %v188
    %v190 = vrot.slane %v189, 2
    %v191 = vadd.f32 %v189, %v190
    %v192 = vrot.slane %v191, 1
    %v193 = vadd.f32 %v191, %v192
    %v194 = vsel %vm72, %v186, 0.0
    %v195 = vrot.slane %v194, 4
    %v196 = vadd.f32 %v194, %v195
    %v197 = vrot.slane %v196, 2
    %v198 = vadd.f32 %v196, %v197
    %v199 = vrot.slane %v198, 1
    %v200 = vadd.f32 %v198, %v199
    %v203 = vsel %vm131, %v200, %v193
    %vm205 = vcmask 254976
    %206 = vst.msk [vmem:[#allocation8] sm:$0x3] %vm205, %v203
    %v207 = vperm.slane %v178, %v128
    %v208 = vperm.slane %v183, %v128
    %v209 = vsel %vm131, %v208, %v207
    %211 = vst.msk [vmem:[#allocation9] sm:$0x3] %vm134, %v209
    // Predicated region
    $region30: #{tpu_custom_call.1} parent=1 // pred_check
      _
    $region31: #{tpu_custom_call.1} parent=1 // pred_check_branch
      %213 = sbr.rel (0) target = $region33
    $region32: #{tpu_custom_call.1} parent=1 // pred_region
      %215 = vsyncadd [#allocation4], 0
      %s217 = sshll.u32 [#allocation8], 4
      %s218 = int_to_ptr.vmem [resolvable:$true] %s217
      %s219 = sshll.u32 %s4, 4
      %s220 = int_to_ptr.hbm [resolvable:$true] %s219
      %222 = dma.vmem_to_hbm [thread:$0]  %s218, 32, %s220, [#allocation4]
    $region33: #{tpu_custom_call.1} parent=1 // pred_fallthru
      _
    // Predicated region
    $region34: #{tpu_custom_call.1} parent=1 // pred_check
      _
    $region35: #{tpu_custom_call.1} parent=1 // pred_check_branch
      %224 = sbr.rel (0) target = $region37
    $region36: #{tpu_custom_call.1} parent=1 // pred_region
      %226 = vsyncadd [#allocation10], 0
      %s228 = sshll.u32 [#allocation9], 4
      %s229 = int_to_ptr.vmem [resolvable:$true] %s228
      %s230 = sshll.u32 %s5, 4
      %s231 = int_to_ptr.hbm [resolvable:$true] %s230
      %233 = dma.vmem_to_hbm [thread:$0]  %s229, 32, %s231, [#allocation10]
    $region37: #{tpu_custom_call.1} parent=1 // pred_fallthru
      _
    // Predicated region
    $region38: #{tpu_custom_call.1} parent=1 // pred_check
      _
    $region39: #{tpu_custom_call.1} parent=1 // pred_check_branch
      %235 = sbr.rel (0) target = $region41
    $region40: #{tpu_custom_call.1} parent=1 // pred_region
      %237 = dma.done [#allocation4], 32
    $region41: #{tpu_custom_call.1} parent=1 // pred_fallthru
      _
    // Predicated region
    $region42: #{tpu_custom_call.1} parent=1 // pred_check
      _
    $region43: #{tpu_custom_call.1} parent=1 // pred_check_branch
      %239 = sbr.rel (0) target = $region45
    $region44: #{tpu_custom_call.1} parent=1 // pred_region
      %241 = dma.done [#allocation10], 32
    $region45: #{tpu_custom_call.1} parent=1 // pred_fallthru
      _
    %242 = vsyncpa [#allocation3], 1
    %243 = vsyncpa [#allocation6], 1
    %244 = vsyncpa [#allocation4], 1
    %245 = vsyncpa [#allocation10], 1

// kernel: tpu_custom_call.1
$region0: #{tpu_custom_call.1}
  #allocation0 [shape = 'u32[]', space=smem, size = 0x4, offset = 0x4, fixed_abs, tag = 'smem constant byte address 0x4 - core index']
  #allocation1 [shape = 'u32[72,128]{1,0:T(1,128)}', space=vmem, size = 0x9000, scoped, tag = 'internal scratch']
  %s0 = inlined_call_operand.hbm [shape: f32[2,8,32], index: 0, kind: input, shape index: {}]
  %s1 = inlined_call_operand.hbm [shape: f32[2,32], index: 1, kind: input, shape index: {}]
  %s2 = inlined_call_operand.hbm [shape: f32[32,32], index: 2, kind: input, shape index: {}]
  %s3 = inlined_call_operand.vmem [shape: f32[1,32], index: 3, kind: input, shape index: {}]
  %s4 = inlined_call_operand.hbm [shape: f32[2,32], index: 4, kind: output, shape index: {0}]
  %s5 = inlined_call_operand.hbm [shape: f32[2,8], index: 5, kind: output, shape index: {1}]
  %6 = xla_tuple %s4, %s5
  %s7 = sld [smem:[#allocation0]]
  $region46: #{tpu_custom_call.1} parent=0
    _
  %s9 = ssub.s32 1, %s7
  %s10 = scalar_select 0, %s9, %s7
  $region1: #{tpu_custom_call.1} parent=0
    #allocation2 [shape = 'u8[8192]{0}', space=vmem, size = 0x2000, scoped, tag = 'input window, operand 0, single buffered']
    #allocation3 [shape = 's32[1]{0}', space=sflag, size = 0x4, scoped, tag = 'scoped memory for tpu_custom_call.1']
    #allocation4 [shape = 's32[1]{0}', space=sflag, size = 0x4, scoped, tag = 'scoped memory for tpu_custom_call.1']
    #allocation5 [shape = 'u8[1024]{0}', space=vmem, size = 0x400, scoped, tag = 'input window, operand 1, single buffered']
    #allocation6 [shape = 's32[1]{0}', space=sflag, size = 0x4, scoped, tag = 'scoped memory for tpu_custom_call.1']
    #allocation7 [shape = 'u8[16384]{0}', space=vmem, size = 0x4000, scoped, tag = 'input window, operand 2, single buffered']
    #allocation8 [shape = 'u8[1024]{0}', space=vmem, size = 0x400, scoped, tag = 'output window, operand 0, single buffered']
    #allocation9 [shape = 'u8[1024]{0}', space=vmem, size = 0x400, scoped, tag = 'output window, operand 1, single buffered']
    #allocation10 [shape = 's32[1]{0}', space=sflag, size = 0x4, scoped, tag = 'scoped memory for tpu_custom_call.1']
    %11 = vsyncpa [#allocation3], 0
    %12 = vsyncpa [#allocation6], 0
    %13 = vsyncpa [#allocation4], 0
    %14 = vsyncpa [#allocation10], 0
    // Predicated region
    $region2: #{tpu_custom_call.1} parent=1 // pred_check
      _
    $region3: #{tpu_custom_call.1} parent=1 // pred_check_branch
      %16 = sbr.rel (0) target = $region5
    $region4: #{tpu_custom_call.1} parent=1 // pred_region
      %18 = vsyncadd [#allocation3], 0
      %s19 = sshll.u32 %s0, 4
      %s20 = int_to_ptr.hbm [resolvable:$true] %s19
      %s21 = sshll.u32 [#allocation2], 4
      %s22 = int_to_ptr.vmem [resolvable:$true] %s21
      %27 = dma.hbm_to_vmem [thread:$0]  %s20, 256, %s22, [#allocation3], 128, 128, 8
    $region5: #{tpu_custom_call.1} parent=1 // pred_fallthru
      _
    // Predicated region
    $region6: #{tpu_custom_call.1} parent=1 // pred_check
      _
    $region7: #{tpu_custom_call.1} parent=1 // pred_check_branch
      %29 = sbr.rel (0) target = $region9
    $region8: #{tpu_custom_call.1} parent=1 // pred_region
      %31 = vsyncadd [#allocation6], 0
      %s33 = sshll.u32 %s1, 4
      %s34 = int_to_ptr.hbm [resolvable:$true] %s33
      %s35 = sshll.u32 [#allocation5], 4
      %s36 = int_to_ptr.vmem [resolvable:$true] %s35
      %38 = dma.hbm_to_vmem [thread:$0]  %s34, 32, %s36, [#allocation6]
    $region9: #{tpu_custom_call.1} parent=1 // pred_fallthru
      _
    // Predicated region
    $region10: #{tpu_custom_call.1} parent=1 // pred_check
      _
    $region11: #{tpu_custom_call.1} parent=1 // pred_check_branch
      %40 = sbr.rel (0) target = $region13
    $region12: #{tpu_custom_call.1} parent=1 // pred_region
      %42 = vsyncadd [#allocation6], 0
      %s43 = sshll.u32 %s2, 4
      %s44 = int_to_ptr.hbm [resolvable:$true] %s43
      %s45 = sshll.u32 [#allocation7], 4
      %s46 = int_to_ptr.vmem [resolvable:$true] %s45
      %51 = dma.hbm_to_vmem [thread:$0]  %s44, 512, %s46, [#allocation6], 128, 128, 8
    $region13: #{tpu_custom_call.1} parent=1 // pred_fallthru
      _
    // Predicated region
    $region14: #{tpu_custom_call.1} parent=1 // pred_check
      _
    $region15: #{tpu_custom_call.1} parent=1 // pred_check_branch
      %53 = sbr.rel (0) target = $region17
    $region16: #{tpu_custom_call.1} parent=1 // pred_region
      _
    $region17: #{tpu_custom_call.1} parent=1 // pred_fallthru
      _
    // Predicated region
    $region18: #{tpu_custom_call.1} parent=1 // pred_check
      _
    $region19: #{tpu_custom_call.1} parent=1 // pred_check_branch
      %55 = sbr.rel (0) target = $region21
    $region20: #{tpu_custom_call.1} parent=1 // pred_region
      %57 = dma.done [#allocation3], 256
    $region21: #{tpu_custom_call.1} parent=1 // pred_fallthru
      _
    // Predicated region
    $region22: #{tpu_custom_call.1} parent=1 // pred_check
      _
    $region23: #{tpu_custom_call.1} parent=1 // pred_check_branch
      %59 = sbr.rel (0) target = $region25
    $region24: #{tpu_custom_call.1} parent=1 // pred_region
      %61 = dma.done [#allocation6], 32
    $region25: #{tpu_custom_call.1} parent=1 // pred_fallthru
      _
    // Predicated region
    $region26: #{tpu_custom_call.1} parent=1 // pred_check
      _
    $region27: #{tpu_custom_call.1} parent=1 // pred_check_branch
      %63 = sbr.rel (0) target = $region29
    $region28: #{tpu_custom_call.1} parent=1 // pred_region
      %65 = dma.done [#allocation6], 512
    $region29: #{tpu_custom_call.1} parent=1 // pred_fallthru
      _
    %v66 = vld [vmem:[#allocation2] sm:$0xff]
    %v67 = vld [vmem:[#allocation2 + $0x8] sm:$0xff]
    %v68 = vld [vmem:[#allocation7] sm:$0xff]
    %v69 = vld [vmem:[#allocation7 + $0x8] sm:$0xff]
    %v70 = vld [vmem:[#allocation7 + $0x10] sm:$0xff]
    %v71 = vld [vmem:[#allocation7 + $0x18] sm:$0xff]
    %vm72 = vcmask 261120
    %v74 = vsel %vm72, %v66, 0
    %v77 = vsel %vm72, %v67, 0
    %79 = vmatpush.msra.mxu0 0.0
    %80 = vmatpush.msra.mxu0 0.0
    %81 = vmatpush.msra.mxu0 0.0
    %82 = vmatpush.msra.mxu0 0.0
    %83 = vmatpush.msra.mxu0 0.0
    %84 = vmatpush.msra.mxu0 0.0
    %85 = vmatpush.msra.mxu0 0.0
    %86 = vmatpush.msra.mxu0 0.0
    %87 = vmatpush.msra.mxu0 0.0
    %88 = vmatpush.msra.mxu0 0.0
    %89 = vmatpush.msra.mxu0 0.0
    %90 = vmatpush.msra.mxu0 0.0
    %91 = vmatpush.msra.mxu0 %v71
    %92 = vmatpush.msra.mxu0 %v70
    %93 = vmatpush.msra.mxu0 %v69
    %94 = vmatpush.msra.mxu0 %v68
    %95 = vmatmul.f32.gmra.mxu0 %v74
    %v96 = vpop.f32.mrf.mxu0
    %v97 = vadd.f32 0.0, %v96
    %98 = vmatmul.f32.gmra.mxu0 %v77
    %v99 = vpop.f32.mrf.mxu0
    %v100 = vadd.f32 0.0, %v99
    %101 = vdwg.mxu0
    %v102 = vld [vmem:[#allocation5] sm:$0x3]
    %v104 = vrot.slane %v102, 1
    %v105 = vperm.slane %v102, 0
    %v106 = vperm.slane %v104, 0
    %v109 = vadd.f32 %v97, %v105
    %v110 = vadd.f32 %v100, %v106
    %v111 = vmax.f32 %v109, 0.0
    %v112 = vmax.f32 %v110, 0.0
    %v113 = vld [vmem:[%s3] sm:$0x1]
    %v115 = vperm.slane %v113, 0
    %v117 = vmul.f32 %v111, %v115
    %v118 = vmul.f32 %v112, %v115
    %v119 = vsel %vm72, %v117, 0.0
    %120 = vadd.xlane.f32.xlu0 %v119
    %v121 = vpop.xlane.xlu0 %120
    %v122 = vsel %vm72, %v118, 0.0
    %123 = vadd.xlane.f32.xlu0 %v122
    %v124 = vpop.xlane.xlu0 %123
    %v127 = vlaneseq
    %v128 = vand.u32 %v127, 127
    %v129 = vperm.slane %v121, %v128
    %v130 = vperm.slane %v124, %v128
    %vm131 = vcmask 1041409
    %v132 = vsel %vm131, %v130, %v129
    %vm134 = vcmask 58368
    %v135 = vsel %vm134, %v132, -inf
    %136 = vmax.xlane.f32.xlu0 %v135
    %v137 = vpop.xlane.xlu0 %136
    %v139 = vperm.slane %v137, 0
    %v140 = vperm.slane %v137, 1
    %v143 = vsub.f32 %v121, %v139
    %v144 = vsub.f32 %v124, %v140
    %v145 = vmul.f32 %v143, 1.442695
    %v146 = vpow.pop %v145
    %v147 = vmul.f32 %v144, 1.442695
    %v148 = vpow.pop %v147
    %151 = vset.pattern.permute.xlu0 0
    %152 = vperm.xlu0 %151, %v146
    %v153 = vpop.permute.xlu0 %152
    %154 = vset.pattern.permute.xlu0 0
    %155 = vperm.xlu0 %154, %v148
    %v156 = vpop.permute.xlu0 %155
    %v157 = vperm.slane %v153, %v128
    %v158 = vperm.slane %v156, %v128
    %v159 = vsel %vm131, %v158, %v157
    %v161 = vsel %vm134, %v159, 0.0
    %162 = vadd.xlane.f32.xlu0 %v161
    %v163 = vpop.xlane.xlu0 %162
    %v164 = vrcp.pop %v163
    %v165 = vmul.f32 %v163, %v164
    %v166 = vsub.f32 2.0, %v165
    %v167 = vmul.f32 %v164, %v166
    %v169 = vperm.slane %v167, 0
    %v170 = vperm.slane %v167, 1
    %v173 = vmul.f32 %v146, %v169
    %v174 = vmul.f32 %v148, %v170
    %176 = vset.pattern.permute.xlu0 0
    %177 = vperm.xlu0 %176, %v173
    %v178 = vpop.permute.xlu0 %177
    %181 = vset.pattern.permute.xlu0 0
    %182 = vperm.xlu0 %181, %v174
    %v183 = vpop.permute.xlu0 %182
    %v185 = vmul.f32 %v66, %v178
    %v186 = vmul.f32 %v67, %v183
    %v187 = vsel %vm72, %v185, 0.0
    %v188 = vrot.slane %v187, 4
    %v189 = vadd.f32 %v187, %v188
    %v190 = vrot.slane %v189, 2
    %v191 = vadd.f32 %v189, %v190
    %v192 = vrot.slane %v191, 1
    %v193 = vadd.f32 %v191, %v192
    %v194 = vsel %vm72, %v186, 0.0
    %v195 = vrot.slane %v194, 4
    %v196 = vadd.f32 %v194, %v195
    %v197 = vrot.slane %v196, 2
    %v198 = vadd.f32 %v196, %v197
    %v199 = vrot.slane %v198, 1
    %v200 = vadd.f32 %v198, %v199
    %v203 = vsel %vm131, %v200, %v193
    %vm205 = vcmask 254976
    %206 = vst.msk [vmem:[#allocation8] sm:$0x3] %vm205, %v203
    %v207 = vperm.slane %v178, %v128
    %v208 = vperm.slane %v183, %v128
    %v209 = vsel %vm131, %v208, %v207
    %211 = vst.msk [vmem:[#allocation9] sm:$0x3] %vm134, %v209
    // Predicated region
    $region30: #{tpu_custom_call.1} parent=1 // pred_check
      _
    $region31: #{tpu_custom_call.1} parent=1 // pred_check_branch
      %213 = sbr.rel (0) target = $region33
    $region32: #{tpu_custom_call.1} parent=1 // pred_region
      %215 = vsyncadd [#allocation4], 0
      %s217 = sshll.u32 [#allocation8], 4
      %s218 = int_to_ptr.vmem [resolvable:$true] %s217
      %s219 = sshll.u32 %s4, 4
      %s220 = int_to_ptr.hbm [resolvable:$true] %s219
      %222 = dma.vmem_to_hbm [thread:$0]  %s218, 32, %s220, [#allocation4]
    $region33: #{tpu_custom_call.1} parent=1 // pred_fallthru
      _
    // Predicated region
    $region34: #{tpu_custom_call.1} parent=1 // pred_check
      _
    $region35: #{tpu_custom_call.1} parent=1 // pred_check_branch
      %224 = sbr.rel (0) target = $region37
    $region36: #{tpu_custom_call.1} parent=1 // pred_region
      %226 = vsyncadd [#allocation10], 0
      %s228 = sshll.u32 [#allocation9], 4
      %s229 = int_to_ptr.vmem [resolvable:$true] %s228
      %s230 = sshll.u32 %s5, 4
      %s231 = int_to_ptr.hbm [resolvable:$true] %s230
      %233 = dma.vmem_to_hbm [thread:$0]  %s229, 32, %s231, [#allocation10]
    $region37: #{tpu_custom_call.1} parent=1 // pred_fallthru
      _
    // Predicated region
    $region38: #{tpu_custom_call.1} parent=1 // pred_check
      _
    $region39: #{tpu_custom_call.1} parent=1 // pred_check_branch
      %235 = sbr.rel (0) target = $region41
    $region40: #{tpu_custom_call.1} parent=1 // pred_region
      %237 = dma.done [#allocation4], 32
    $region41: #{tpu_custom_call.1} parent=1 // pred_fallthru
      _
    // Predicated region
    $region42: #{tpu_custom_call.1} parent=1 // pred_check
      _
    $region43: #{tpu_custom_call.1} parent=1 // pred_check_branch
      %239 = sbr.rel (0) target = $region45
    $region44: #{tpu_custom_call.1} parent=1 // pred_region
      %241 = dma.done [#allocation10], 32
    $region45: #{tpu_custom_call.1} parent=1 // pred_fallthru
      _
    %242 = vsyncpa [#allocation3], 1
    %243 = vsyncpa [#allocation6], 1
    %244 = vsyncpa [#allocation4], 1
    %245 = vsyncpa [#allocation10], 1

</llo_original>
